<compile_context>
chip_gen: v7x
topology: tpu7x:2x2x1
jax: 0.10.0
libtpu: 0.0.40
codegen_flags: <defaults>
</compile_context>

<pallas_src>
import math

import jax
import jax.numpy as jnp
from jax.experimental import pallas as pl
from jax.experimental.pallas import tpu as pltpu


def _shift_kernel(x_ref, b_ref, o_ref):
    # x_ref: (TM, L) tile; b_ref: (1, L) bias row (VMEM-resident, sublane
    # broadcast is a single VPU add per vreg).
    o_ref[...] = x_ref[...] + b_ref[...]


def _sublane_multiple(dtype) -> int:
    itemsize = jnp.dtype(dtype).itemsize
    return max(8, 32 // itemsize)  # 8 for f32, 16 for bf16, 32 for int8


def _round_up(a: int, b: int) -> int:
    return ((a + b - 1) // b) * b


def shift(x: jax.Array, bias: jax.Array, *, target_tile_bytes: int = 4 << 20) -> jax.Array:
    """Adds `bias` (shape (dim,)) to `x` along its last dimension."""
    assert x.shape[-1] == bias.shape[0], "last dim of x must equal dim"
    orig_shape = x.shape
    d = x.shape[-1]

    # Match `x + bias` dtype-promotion semantics.
    out_dtype = jnp.result_type(x.dtype, bias.dtype)
    itemsize = jnp.dtype(out_dtype).itemsize

    # Lane-dense row width: multiple of both dim and 128 when practical.
    if d % 128 == 0:
        lane_w = d
    else:
        lane_w = (d * 128) // math.gcd(d, 128)
        if lane_w * itemsize > (1 << 20):
            # Pathological dim: fall back to raw dim (correct, but masked stores).
            lane_w = d
    reps = lane_w // d

    xf = x.reshape(-1).astype(out_dtype)
    n = xf.shape[0]

    # Rows of width lane_w needed to hold the data.
    m0 = pl.cdiv(n, lane_w)

    # Row tile: ~target_tile_bytes per tile, multiple of the sublane tile,
    # never larger than the (sublane-rounded) row count.
    sub = _sublane_multiple(out_dtype)
    tm = max(target_tile_bytes // (lane_w * itemsize), 1)
    tm = max((tm // sub) * sub, sub)
    tm = min(tm, _round_up(m0, sub))

    # Pad flat data so M is an exact multiple of tm -> exact grid, pipelined.
    m = _round_up(m0, tm)
    pad = m * lane_w - n
    if pad:
        xf = jnp.pad(xf, (0, pad))
    x2 = xf.reshape(m, lane_w)

    # Pre-tiled, pre-cast bias row (wrapper-side layout plumbing only).
    b2 = jnp.tile(bias.astype(out_dtype), reps).reshape(1, lane_w)

    out = pl.pallas_call(
        _shift_kernel,
        out_shape=jax.ShapeDtypeStruct((m, lane_w), out_dtype),
        grid_spec=pltpu.PrefetchScalarGridSpec(
            num_scalar_prefetch=0,
            grid=(m // tm,),
            in_specs=[
                pl.BlockSpec((tm, lane_w), lambda i: (i, 0)),
                pl.BlockSpec((1, lane_w), lambda i: (0, 0)),  # constant block: stays in VMEM
            ],
            out_specs=pl.BlockSpec((tm, lane_w), lambda i: (i, 0)),
        ),
        compiler_params=pltpu.CompilerParams(
            dimension_semantics=("parallel",),  # shards the row grid across TCs on v7x
        ),
    )(x2, b2)

    out_flat = out.reshape(-1)
    if pad:
        out_flat = out_flat[:n]
    return out_flat.reshape(orig_shape)


if __name__ == "__main__":
    key = jax.random.PRNGKey(0)
    kx, kb = jax.random.split(key)

    batch, seq, dim = 2, 8, 32

    # Deterministic parameter init matching nn.Parameter(...).uniform_(-0.03, -0.006)
    bias = jax.random.uniform(
        kb, (dim,), dtype=jnp.float32, minval=-0.03, maxval=-0.006
    )
    x = jax.random.normal(kx, (batch, seq, dim), dtype=jnp.float32)

    y = jax.block_until_ready(shift(x, bias))

    # Correctness check against plain-JAX reference (same broadcast/promotion
    # semantics as torch.add(input, bias)).
    ref = x + bias
    assert y.shape == ref.shape and y.dtype == ref.dtype
    assert jnp.allclose(y, ref, atol=1e-6), "mismatch vs reference"

    print("KERNEL_OK")
</pallas_src>

<mosaic_0001>
module attributes {stable_mosaic.version = 11 : i64} {
  func.func @_shift_kernel(%arg0: i32, %arg1: memref<8x128xf32, #tpu.memory_space<vmem>>, %arg2: memref<1x128xf32, #tpu.memory_space<vmem>>, %arg3: memref<8x128xf32, #tpu.memory_space<vmem>>) attributes {dimension_semantics = [#tpu.dimension_semantics<parallel>], iteration_bounds = array<i64: 1>, scalar_prefetch = 0 : i64, scratch_operands = 0 : i64, tpu.core_type = #tpu.core_type<tc>, window_params = [{transform_indices = @transform_0, window_bounds = array<i64: 8, 128>}, {pipeline_mode = #tpu.pipeline_mode<synchronous>, transform_indices = @transform_1, window_bounds = array<i64: 1, 128>}, {transform_indices = @transform_2, window_bounds = array<i64: 8, 128>}]} {
    %c0 = arith.constant 0 : index
    %c0_0 = arith.constant 0 : index
    %0 = vector.load %arg1[%c0, %c0_0] : memref<8x128xf32, #tpu.memory_space<vmem>>, vector<8x128xf32>
    %c0_1 = arith.constant 0 : index
    %c0_2 = arith.constant 0 : index
    %1 = vector.load %arg2[%c0_1, %c0_2] : memref<1x128xf32, #tpu.memory_space<vmem>>, vector<1x128xf32>
    %2 = vector.broadcast %1 : vector<1x128xf32> to vector<8x128xf32>
    %3 = arith.addf %0, %2 : vector<8x128xf32>
    %c0_3 = arith.constant 0 : index
    %c0_4 = arith.constant 0 : index
    %4 = vector.load %arg3[%c0_3, %c0_4] : memref<8x128xf32, #tpu.memory_space<vmem>>, vector<8x128xf32>
    tpu.vector_store %arg3[%c0_3, %c0_4], %3 {strides = array<i32>} : memref<8x128xf32, #tpu.memory_space<vmem>>, vector<8x128xf32>,
    return
  }
  func.func @transform_0(%arg0: i32) -> (i32, i32) {
    %c0_i32 = arith.constant 0 : i32
    %c0_i32_0 = arith.constant 0 : i32
    return %arg0, %c0_i32 : i32, i32
  }
  func.func @transform_1(%arg0: i32) -> (i32, i32) {
    %c0_i32 = arith.constant 0 : i32
    %c0_i32_0 = arith.constant 0 : i32
    %c0_i32_1 = arith.constant 0 : i32
    return %c0_i32, %c0_i32_0 : i32, i32
  }
  func.func @transform_2(%arg0: i32) -> (i32, i32) {
    %c0_i32 = arith.constant 0 : i32
    %c0_i32_0 = arith.constant 0 : i32
    return %arg0, %c0_i32 : i32, i32
  }
}

</mosaic_0001>

<llo_original>
// kernel: tpu_custom_call.1
$region0: #{tpu_custom_call.1}
  #allocation0 [shape = 'u32[]', space=smem, size = 0x4, offset = 0x4, fixed_abs, tag = 'smem constant byte address 0x4 - core index']
  #allocation1 [shape = 'u32[144,128]{1,0:T(1,128)}', space=vmem, size = 0x12000, scoped, tag = 'internal scratch']
  %s0 = inlined_call_operand.hbm [shape: f32[8,128], index: 0, kind: input, shape index: {}]
  %s1 = inlined_call_operand.vmem [shape: f32[1,128], index: 1, kind: input, shape index: {}]
  %s2 = inlined_call_operand.hbm [shape: f32[8,128], index: 2, kind: output, shape index: {}]
  %s3 = sld [smem:[#allocation0]]
  $region22: #{tpu_custom_call.1} parent=0
    _
  %s5 = ssub.s32 1, %s3
  %s6 = scalar_select 0, %s5, %s3
  $region1: #{tpu_custom_call.1} parent=0
    #allocation2 [shape = 'u8[4096]{0}', space=vmem, size = 0x1000, scoped, tag = 'input window, operand 0, single buffered']
    #allocation3 [shape = 's32[1]{0}', space=sflag, size = 0x4, scoped, tag = 'scoped memory for tpu_custom_call.1']
    #allocation4 [shape = 's32[1]{0}', space=sflag, size = 0x4, scoped, tag = 'scoped memory for tpu_custom_call.1']
    #allocation5 [shape = 'u8[4096]{0}', space=vmem, size = 0x1000, scoped, tag = 'output window, operand 0, single buffered']
    %7 = vsyncpa [#allocation3], 0
    %8 = vsyncpa [#allocation4], 0
    // Predicated region
    $region2: #{tpu_custom_call.1} parent=1 // pred_check
      _
    $region3: #{tpu_custom_call.1} parent=1 // pred_check_branch
      %10 = sbr.rel (0) target = $region5
    $region4: #{tpu_custom_call.1} parent=1 // pred_region
      %s12 = ssub.s32 128, 128
      %13 = vsyncadd [#allocation3], %s12
      %s15 = sshll.u32 [#allocation2], 4
      %s16 = int_to_ptr.vmem [resolvable:$true] %s15
      %18 = dma.hbm_to_vmem [thread:$0]  %s0, 128, %s16, [#allocation3]
    $region5: #{tpu_custom_call.1} parent=1 // pred_fallthru
      _
    // Predicated region
    $region6: #{tpu_custom_call.1} parent=1 // pred_check
      _
    $region7: #{tpu_custom_call.1} parent=1 // pred_check_branch
      %20 = sbr.rel (0) target = $region9
    $region8: #{tpu_custom_call.1} parent=1 // pred_region
      _
    $region9: #{tpu_custom_call.1} parent=1 // pred_fallthru
      _
    // Predicated region
    $region10: #{tpu_custom_call.1} parent=1 // pred_check
      _
    $region11: #{tpu_custom_call.1} parent=1 // pred_check_branch
      %22 = sbr.rel (0) target = $region13
    $region12: #{tpu_custom_call.1} parent=1 // pred_region
      %23 = dma.done [#allocation3], 128
    $region13: #{tpu_custom_call.1} parent=1 // pred_fallthru
      _
    %v24 = vld [vmem:[#allocation2] sm:$0xff]
    %v25 = vld [vmem:[%s1] sm:$0x1]
    %v27 = vlaneseq
    %v28 = vshrl.u32 %v27, 7
    %v29 = vsub.s32 0, %v28
    %v30 = vrot.slane %v25, %v29
    %v32 = vadd.f32 %v24, %v30
    %33 = vst [vmem:[#allocation5] sm:$0xff] %v32
    // Predicated region
    $region14: #{tpu_custom_call.1} parent=1 // pred_check
      _
    $region15: #{tpu_custom_call.1} parent=1 // pred_check_branch
      %35 = sbr.rel (0) target = $region17
    $region16: #{tpu_custom_call.1} parent=1 // pred_region
      %s37 = ssub.s32 128, 128
      %38 = vsyncadd [#allocation4], %s37
      %s40 = sshll.u32 [#allocation5], 4
      %s41 = int_to_ptr.vmem [resolvable:$true] %s40
      %43 = dma.vmem_to_hbm [thread:$0]  %s41, 128, %s2, [#allocation4]
    $region17: #{tpu_custom_call.1} parent=1 // pred_fallthru
      _
    // Predicated region
    $region18: #{tpu_custom_call.1} parent=1 // pred_check
      _
    $region19: #{tpu_custom_call.1} parent=1 // pred_check_branch
      %45 = sbr.rel (0) target = $region21
    $region20: #{tpu_custom_call.1} parent=1 // pred_region
      %46 = dma.done [#allocation4], 128
    $region21: #{tpu_custom_call.1} parent=1 // pred_fallthru
      _
    %47 = vsyncpa [#allocation3], 1
    %48 = vsyncpa [#allocation4], 1

</llo_original>
